<compile_context>
chip_gen: v7x
topology: tpu7x:2x2x1
jax: 0.10.0
libtpu: 0.0.40
codegen_flags: <defaults>
</compile_context>

<pallas_src>
import functools
import math

import jax
import jax.numpy as jnp
from jax import lax
from jax.experimental import pallas as pl
from jax.experimental.pallas import tpu as pltpu

EPS = 1e-6                        # matches convert_coeff eps
_LANE = 128
_SUBLANE = 8
_VMEM_BUDGET = 40 * 1024 * 1024   # conservative tile budget (v7x has 64 MiB VMEM)
_VMEM_LIMIT = 48 * 1024 * 1024    # scoped-VMEM limit handed to Mosaic
_ROW_TILE_CAP = 1024


def _round_up(n, m):
    return ((n + m - 1) // m) * m


def _choose_tm(bn, lp, f2p):
    """Largest row tile (multiple of 8) fitting the VMEM budget, preferring at
    least two grid steps so both v7x TensorCores are used."""
    if bn <= _SUBLANE:
        return _SUBLANE
    tm = min(_ROW_TILE_CAP, _round_up(-(-bn // 2), _SUBLANE))
    const_b = lp * f2p * 4 * 2                  # DFT matrix, double-buffered
    per_row = 3 * lp * 4 * 2 + 4 * f2p * 4      # x/fft/res tiles (2x buf) + live temps
    tm_fit = (_VMEM_BUDGET - const_b) // per_row
    tm_fit = max(_SUBLANE, (tm_fit // _SUBLANE) * _SUBLANE)
    return max(_SUBLANE, min(tm, tm_fit))


def _topk_fft_kernel(x_ref, w_ref, fft_ref, res_ref, *, k, n_freq, f_pad, inv_l):
    x = x_ref[...]                                                   # (TM, Lp)
    w = w_ref[...]                                                   # (Lp, 2Fp) = [cos | -sin]

    # ---- forward real DFT in ONE MXU pass: cols [0:F)=Re, [Fp:Fp+F)=Im ----
    xy = jnp.dot(x, w, preferred_element_type=jnp.float32)           # (TM, 2Fp)
    xre = xy[:, :f_pad]
    xim = xy[:, f_pad:]

    # ---- squared amplitude (sqrt dropped: monotone, ordering-only) ----
    a = xre + EPS
    b = xim + EPS
    sq = a * a + b * b                                               # (TM, Fp)

    fi = lax.broadcasted_iota(jnp.int32, sq.shape, 1)
    valid = fi < n_freq                                              # exclude padded freq cols
    # Hermitian irfft weights w[f]/L folded into the selection mask so the
    # inverse DFT can reuse the forward matrix (no separate ci/si constants).
    scale = jnp.where(valid,
                      jnp.where((fi == 0) | (fi == n_freq - 1), inv_l, 2.0 * inv_l),
                      0.0)
    work = jnp.where(valid, sq, -jnp.inf)

    # ---- iterative top-k: ONE XLU reduction per step (max + equality select).
    # Exact ties select all tied frequencies in one step (torch.topk breaks
    # them arbitrarily); irrelevant for continuous-valued data.
    mask = jnp.zeros_like(sq)
    for _ in range(k):                                               # static k -> unrolled
        cur_max = jnp.max(work, axis=-1, keepdims=True)              # (TM, 1)
        sel = work == cur_max
        mask = jnp.where(sel, scale, mask)
        work = jnp.where(sel, -jnp.inf, work)

    # ---- masked + pre-scaled spectrum; inverse DFT = S @ W^T (same matrix) ----
    s = xy * jnp.concatenate([mask, mask], axis=-1)                  # (TM, 2Fp)
    xf = lax.dot_general(s, w, dimension_numbers=(((1,), (1,)), ((), ())),
                         preferred_element_type=jnp.float32)         # (TM, Lp)

    fft_ref[...] = xf
    res_ref[...] = x - xf


def topk_fft_decomp(x, k):
    """x: (B, L, C) float32, FFT along axis 1. Returns (x_fft, x_res), each (B, L, C)."""
    B, L, C = x.shape
    assert L % 2 == 0, "irfft with default n requires an even seq_len here"
    F = L // 2 + 1
    k = int(k)
    assert 0 < k <= F

    Lp = _round_up(L, _LANE)            # lane-dense time axis
    Fp = _round_up(F, _LANE)            # lane-dense frequency axis (per half)
    F2p = 2 * Fp

    # Single DFT constant: W[t, f] = cos(2*pi*f*t/L), W[t, Fp+f] = -sin(2*pi*f*t/L).
    t = jnp.arange(L, dtype=jnp.float32)[:, None]
    f = jnp.arange(F, dtype=jnp.float32)[None, :]
    ang = 2.0 * math.pi * t * f / L
    w_fwd = jnp.zeros((Lp, F2p), jnp.float32)
    w_fwd = w_fwd.at[:L, :F].set(jnp.cos(ang)).at[:L, Fp:Fp + F].set(-jnp.sin(ang))
    # TODO(synk): bf16 MXU operands (review item) would give ~3-6x matmul throughput
    # but miss the 2e-3 accuracy validation at these scales, so dots remain f32.

    # Channel-independent layout: series on sublanes, time on lanes (C here is
    # far below lane width, so this layout beats keeping channels on lanes).
    BN = B * C
    x2 = jnp.transpose(x, (0, 2, 1)).reshape(BN, L).astype(jnp.float32)

    TM = _choose_tm(BN, Lp, F2p)
    BNp = _round_up(BN, TM)
    x2p = jnp.pad(x2, ((0, BNp - BN), (0, Lp - L)))   # zero rows/cols: exact math

    xf2, xr2 = pl.pallas_call(
        functools.partial(_topk_fft_kernel, k=k, n_freq=F, f_pad=Fp, inv_l=1.0 / L),
        out_shape=(jax.ShapeDtypeStruct((BNp, Lp), jnp.float32),
                   jax.ShapeDtypeStruct((BNp, Lp), jnp.float32)),
        grid=(BNp // TM,),
        in_specs=[pl.BlockSpec((TM, Lp), lambda i: (i, 0)),
                  pl.BlockSpec((Lp, F2p), lambda i: (0, 0))],
        out_specs=(pl.BlockSpec((TM, Lp), lambda i: (i, 0)),
                   pl.BlockSpec((TM, Lp), lambda i: (i, 0))),
        compiler_params=pltpu.CompilerParams(
            dimension_semantics=("parallel",),
            vmem_limit_bytes=_VMEM_LIMIT),
    )(x2p, w_fwd)

    x_fft = xf2[:BN, :L].reshape(B, C, L).transpose(0, 2, 1)
    x_res = xr2[:BN, :L].reshape(B, C, L).transpose(0, 2, 1)
    return x_fft, x_res


if __name__ == "__main__":
    key = jax.random.PRNGKey(0)
    B, L, C, K = 2, 16, 4, 3
    x = jax.random.normal(key, (B, L, C), dtype=jnp.float32)

    fwd = jax.jit(functools.partial(topk_fft_decomp, k=K))
    x_fft, x_res = jax.block_until_ready(fwd(x))

    # Pure-JAX reference (rfft / top-k mask / irfft), same semantics as torch.
    xfft = jnp.fft.rfft(x, axis=1)                                    # (B, F, C)
    amp = jnp.sqrt((xfft.real + EPS) ** 2 + (xfft.imag + EPS) ** 2)
    _, idx = lax.top_k(jnp.transpose(amp, (0, 2, 1)), K)              # (B, C, K)
    mask = jnp.sum(jax.nn.one_hot(idx, amp.shape[1], dtype=jnp.float32), axis=-2)
    mask = jnp.transpose(mask, (0, 2, 1))                             # (B, F, C)
    xf_ref = jnp.fft.irfft(xfft * mask, axis=1)
    xr_ref = x - xf_ref

    assert x_fft.shape == (B, L, C) and x_res.shape == (B, L, C)
    assert bool(jnp.all(jnp.isfinite(x_fft))) and bool(jnp.all(jnp.isfinite(x_res)))
    assert bool(jnp.allclose(x_fft, xf_ref, atol=2e-3, rtol=2e-3)), \
        float(jnp.max(jnp.abs(x_fft - xf_ref)))
    assert bool(jnp.allclose(x_res, xr_ref, atol=2e-3, rtol=2e-3))
    print("KERNEL_OK")
</pallas_src>

<mosaic_0001>
module attributes {stable_mosaic.version = 11 : i64} {
  func.func @_topk_fft_kernel(%arg0: i32, %arg1: memref<8x128xf32, #tpu.memory_space<vmem>>, %arg2: memref<128x256xf32, #tpu.memory_space<vmem>>, %arg3: memref<8x128xf32, #tpu.memory_space<vmem>>, %arg4: memref<8x128xf32, #tpu.memory_space<vmem>>) attributes {dimension_semantics = [#tpu.dimension_semantics<parallel>], iteration_bounds = array<i64: 1>, scalar_prefetch = 0 : i64, scratch_operands = 0 : i64, tpu.core_type = #tpu.core_type<tc>, window_params = [{transform_indices = @transform_0, window_bounds = array<i64: 8, 128>}, {pipeline_mode = #tpu.pipeline_mode<synchronous>, transform_indices = @transform_1, window_bounds = array<i64: 128, 256>}, {transform_indices = @transform_2, window_bounds = array<i64: 8, 128>}, {transform_indices = @transform_3, window_bounds = array<i64: 8, 128>}]} {
    %c0 = arith.constant 0 : index
    %c0_0 = arith.constant 0 : index
    %0 = vector.load %arg1[%c0, %c0_0] : memref<8x128xf32, #tpu.memory_space<vmem>>, vector<8x128xf32>
    %c0_1 = arith.constant 0 : index
    %c0_2 = arith.constant 0 : index
    %1 = vector.load %arg2[%c0_1, %c0_2] : memref<128x256xf32, #tpu.memory_space<vmem>>, vector<128x256xf32>
    %cst = arith.constant dense<0.000000e+00> : vector<8x256xf32>
    %2 = tpu.matmul %0, %1, %cst {dimension_numbers = #tpu.dot_dimension_numbers<[1], [0], [0], [1], [0, 0, 1, 1], [], []>} : vector<8x128xf32>, vector<128x256xf32>, vector<8x256xf32> -> vector<8x256xf32>
    %3 = vector.extract_strided_slice %2 {offsets = [0, 0], sizes = [8, 128], strides = [1, 1]} : vector<8x256xf32> to vector<8x128xf32>
    %4 = vector.extract_strided_slice %2 {offsets = [0, 128], sizes = [8, 128], strides = [1, 1]} : vector<8x256xf32> to vector<8x128xf32>
    %cst_3 = arith.constant 9.99999997E-7 : f32
    %5 = vector.broadcast %cst_3 : f32 to vector<8x128xf32>
    %6 = arith.addf %3, %5 : vector<8x128xf32>
    %cst_4 = arith.constant 9.99999997E-7 : f32
    %7 = vector.broadcast %cst_4 : f32 to vector<8x128xf32>
    %8 = arith.addf %4, %7 : vector<8x128xf32>
    %9 = arith.mulf %6, %6 : vector<8x128xf32>
    %10 = arith.mulf %8, %8 : vector<8x128xf32>
    %11 = arith.addf %9, %10 : vector<8x128xf32>
    %12 = tpu.iota {dimensions = array<i32: 1>} : vector<8x128xi32>
    %c9_i32 = arith.constant 9 : i32
    %13 = vector.broadcast %c9_i32 : i32 to vector<8x128xi32>
    %14 = arith.cmpi slt, %12, %13 : vector<8x128xi32>
    %c0_i32 = arith.constant 0 : i32
    %15 = vector.broadcast %c0_i32 : i32 to vector<8x128xi32>
    %16 = arith.cmpi eq, %12, %15 : vector<8x128xi32>
    %c8_i32 = arith.constant 8 : i32
    %17 = vector.broadcast %c8_i32 : i32 to vector<8x128xi32>
    %18 = arith.cmpi eq, %12, %17 : vector<8x128xi32>
    %19 = arith.ori %16, %18 : vector<8x128xi1>
    %cst_5 = arith.constant 6.250000e-02 : f32
    %cst_6 = arith.constant 1.250000e-01 : f32
    %20 = vector.broadcast %cst_5 : f32 to vector<8x128xf32>
    %21 = vector.broadcast %cst_6 : f32 to vector<8x128xf32>
    %22 = arith.select %19, %20, %21 : vector<8x128xi1>, vector<8x128xf32>
    %cst_7 = arith.constant 0.000000e+00 : f32
    %23 = vector.broadcast %cst_7 : f32 to vector<8x128xf32>
    %24 = arith.select %14, %22, %23 : vector<8x128xi1>, vector<8x128xf32>
    %cst_8 = arith.constant 0xFF800000 : f32
    %25 = vector.broadcast %cst_8 : f32 to vector<8x128xf32>
    %26 = arith.select %14, %11, %25 : vector<8x128xi1>, vector<8x128xf32>
    %cst_9 = arith.constant 0.000000e+00 : f32
    %27 = vector.broadcast %cst_9 : f32 to vector<8x128xf32>
    %cst_10 = arith.constant dense<0xFF800000> : vector<8xf32>
    %28 = vector.multi_reduction <maximumf>, %26, %cst_10 [1] : vector<8x128xf32> to vector<8xf32>
    %29 = vector.shape_cast %28 : vector<8xf32> to vector<8x1xf32>
    %30 = vector.broadcast %29 : vector<8x1xf32> to vector<8x128xf32>
    %31 = arith.cmpf oeq, %26, %30 : vector<8x128xf32>
    %32 = arith.select %31, %24, %27 : vector<8x128xi1>, vector<8x128xf32>
    %cst_11 = arith.constant 0xFF800000 : f32
    %33 = vector.broadcast %cst_11 : f32 to vector<8x128xf32>
    %34 = arith.select %31, %33, %26 : vector<8x128xi1>, vector<8x128xf32>
    %cst_12 = arith.constant dense<0xFF800000> : vector<8xf32>
    %35 = vector.multi_reduction <maximumf>, %34, %cst_12 [1] : vector<8x128xf32> to vector<8xf32>
    %36 = vector.shape_cast %35 : vector<8xf32> to vector<8x1xf32>
    %37 = vector.broadcast %36 : vector<8x1xf32> to vector<8x128xf32>
    %38 = arith.cmpf oeq, %34, %37 : vector<8x128xf32>
    %39 = arith.select %38, %24, %32 : vector<8x128xi1>, vector<8x128xf32>
    %cst_13 = arith.constant 0xFF800000 : f32
    %40 = vector.broadcast %cst_13 : f32 to vector<8x128xf32>
    %41 = arith.select %38, %40, %34 : vector<8x128xi1>, vector<8x128xf32>
    %cst_14 = arith.constant dense<0xFF800000> : vector<8xf32>
    %42 = vector.multi_reduction <maximumf>, %41, %cst_14 [1] : vector<8x128xf32> to vector<8xf32>
    %43 = vector.shape_cast %42 : vector<8xf32> to vector<8x1xf32>
    %44 = vector.broadcast %43 : vector<8x1xf32> to vector<8x128xf32>
    %45 = arith.cmpf oeq, %41, %44 : vector<8x128xf32>
    %46 = arith.select %45, %24, %39 : vector<8x128xi1>, vector<8x128xf32>
    %47 = tpu.concatenate %46, %46 in 1 : vector<8x128xf32>, vector<8x128xf32> -> vector<8x256xf32>
    %48 = arith.mulf %2, %47 : vector<8x256xf32>
    %cst_15 = arith.constant dense<0.000000e+00> : vector<8x128xf32>
    %49 = tpu.matmul %48, %1, %cst_15 {dimension_numbers = #tpu.dot_dimension_numbers<[1], [1], [0], [0], [0, 0, 1, 0], [], []>} : vector<8x256xf32>, vector<128x256xf32>, vector<8x128xf32> -> vector<8x128xf32>
    %c0_16 = arith.constant 0 : index
    %c0_17 = arith.constant 0 : index
    %50 = vector.load %arg3[%c0_16, %c0_17] : memref<8x128xf32, #tpu.memory_space<vmem>>, vector<8x128xf32>
    tpu.vector_store %arg3[%c0_16, %c0_17], %49 {strides = array<i32>} : memref<8x128xf32, #tpu.memory_space<vmem>>, vector<8x128xf32>,
    %51 = arith.subf %0, %49 : vector<8x128xf32>
    %c0_18 = arith.constant 0 : index
    %c0_19 = arith.constant 0 : index
    %52 = vector.load %arg4[%c0_18, %c0_19] : memref<8x128xf32, #tpu.memory_space<vmem>>, vector<8x128xf32>
    tpu.vector_store %arg4[%c0_18, %c0_19], %51 {strides = array<i32>} : memref<8x128xf32, #tpu.memory_space<vmem>>, vector<8x128xf32>,
    return
  }
  func.func @transform_0(%arg0: i32) -> (i32, i32) {
    %c0_i32 = arith.constant 0 : i32
    %c0_i32_0 = arith.constant 0 : i32
    return %arg0, %c0_i32 : i32, i32
  }
  func.func @transform_1(%arg0: i32) -> (i32, i32) {
    %c0_i32 = arith.constant 0 : i32
    %c0_i32_0 = arith.constant 0 : i32
    %c0_i32_1 = arith.constant 0 : i32
    return %c0_i32, %c0_i32_0 : i32, i32
  }
  func.func @transform_2(%arg0: i32) -> (i32, i32) {
    %c0_i32 = arith.constant 0 : i32
    %c0_i32_0 = arith.constant 0 : i32
    return %arg0, %c0_i32 : i32, i32
  }
  func.func @transform_3(%arg0: i32) -> (i32, i32) {
    %c0_i32 = arith.constant 0 : i32
    %c0_i32_0 = arith.constant 0 : i32
    return %arg0, %c0_i32 : i32, i32
  }
}

</mosaic_0001>

<llo_original>
// kernel: topk_fft_decomp.1
$region0: #{topk_fft_decomp.1}
  #allocation0 [shape = 'u32[]', space=smem, size = 0x4, offset = 0x4, fixed_abs, tag = 'smem constant byte address 0x4 - core index']
  #allocation1 [shape = 'u32[144,128]{1,0:T(1,128)}', space=vmem, size = 0x12000, scoped, tag = 'internal scratch']
  %s0 = inlined_call_operand.vmem [shape: f32[8,128], index: 0, kind: input, shape index: {}]
  %s1 = inlined_call_operand.vmem [shape: f32[128,256], index: 1, kind: input, shape index: {}]
  %s2 = inlined_call_operand.hbm [shape: f32[8,128], index: 2, kind: output, shape index: {0}]
  %s3 = inlined_call_operand.hbm [shape: f32[8,128], index: 3, kind: output, shape index: {1}]
  %4 = xla_tuple %s2, %s3
  %s5 = sld [smem:[#allocation0]]
  $region26: #{topk_fft_decomp.1} parent=0
    _
  %s7 = ssub.s32 1, %s5
  %s8 = scalar_select 0, %s7, %s5
  $region1: #{topk_fft_decomp.1} parent=0
    #allocation2 [shape = 'u8[4096]{0}', space=vmem, size = 0x1000, scoped, tag = 'output window, operand 0, single buffered']
    #allocation3 [shape = 's32[1]{0}', space=sflag, size = 0x4, scoped, tag = 'scoped memory for topk_fft_decomp.1']
    #allocation4 [shape = 'u8[4096]{0}', space=vmem, size = 0x1000, scoped, tag = 'output window, operand 1, single buffered']
    #allocation5 [shape = 's32[1]{0}', space=sflag, size = 0x4, scoped, tag = 'scoped memory for topk_fft_decomp.1']
    %9 = vsyncpa [#allocation3], 0
    %10 = vsyncpa [#allocation5], 0
    // Predicated region
    $region2: #{topk_fft_decomp.1} parent=1 // pred_check
      _
    $region3: #{topk_fft_decomp.1} parent=1 // pred_check_branch
      %12 = sbr.rel (0) target = $region5
    $region4: #{topk_fft_decomp.1} parent=1 // pred_region
      _
    $region5: #{topk_fft_decomp.1} parent=1 // pred_fallthru
      _
    // Predicated region
    $region6: #{topk_fft_decomp.1} parent=1 // pred_check
      _
    $region7: #{topk_fft_decomp.1} parent=1 // pred_check_branch
      %14 = sbr.rel (0) target = $region9
    $region8: #{topk_fft_decomp.1} parent=1 // pred_region
      _
    $region9: #{topk_fft_decomp.1} parent=1 // pred_fallthru
      _
    %v15 = vld [vmem:[%s0] sm:$0xff]
    %v16 = vld [vmem:[%s1] sm:$0xff]
    %v17 = vld [vmem:[%s1 + $0x8] sm:$0xff]
    %v18 = vld [vmem:[%s1 + $0x10] sm:$0xff]
    %v19 = vld [vmem:[%s1 + $0x18] sm:$0xff]
    %v20 = vld [vmem:[%s1 + $0x20] sm:$0xff]
    %v21 = vld [vmem:[%s1 + $0x28] sm:$0xff]
    %v22 = vld [vmem:[%s1 + $0x30] sm:$0xff]
    %v23 = vld [vmem:[%s1 + $0x38] sm:$0xff]
    %v24 = vld [vmem:[%s1 + $0x40] sm:$0xff]
    %v25 = vld [vmem:[%s1 + $0x48] sm:$0xff]
    %v26 = vld [vmem:[%s1 + $0x50] sm:$0xff]
    %v27 = vld [vmem:[%s1 + $0x58] sm:$0xff]
    %v28 = vld [vmem:[%s1 + $0x60] sm:$0xff]
    %v29 = vld [vmem:[%s1 + $0x68] sm:$0xff]
    %v30 = vld [vmem:[%s1 + $0x70] sm:$0xff]
    %v31 = vld [vmem:[%s1 + $0x78] sm:$0xff]
    %v32 = vld [vmem:[%s1 + $0x80] sm:$0xff]
    %v33 = vld [vmem:[%s1 + $0x88] sm:$0xff]
    %v34 = vld [vmem:[%s1 + $0x90] sm:$0xff]
    %v35 = vld [vmem:[%s1 + $0x98] sm:$0xff]
    %v36 = vld [vmem:[%s1 + $0xa0] sm:$0xff]
    %v37 = vld [vmem:[%s1 + $0xa8] sm:$0xff]
    %v38 = vld [vmem:[%s1 + $0xb0] sm:$0xff]
    %v39 = vld [vmem:[%s1 + $0xb8] sm:$0xff]
    %v40 = vld [vmem:[%s1 + $0xc0] sm:$0xff]
    %v41 = vld [vmem:[%s1 + $0xc8] sm:$0xff]
    %v42 = vld [vmem:[%s1 + $0xd0] sm:$0xff]
    %v43 = vld [vmem:[%s1 + $0xd8] sm:$0xff]
    %v44 = vld [vmem:[%s1 + $0xe0] sm:$0xff]
    %v45 = vld [vmem:[%s1 + $0xe8] sm:$0xff]
    %v46 = vld [vmem:[%s1 + $0xf0] sm:$0xff]
    %v47 = vld [vmem:[%s1 + $0xf8] sm:$0xff]
    %48 = vmatprep.subr.mxu0 %v17
    %49 = vmatpush1.msra.mxu0 %v16
    %50 = vmatprep.subr.mxu0 %v19
    %51 = vmatpush1.msra.mxu0 %v18
    %52 = vmatprep.subr.mxu0 %v21
    %53 = vmatpush1.msra.mxu0 %v20
    %54 = vmatprep.subr.mxu0 %v23
    %55 = vmatpush1.msra.mxu0 %v22
    %56 = vmatprep.subr.mxu0 %v25
    %57 = vmatpush1.msra.mxu0 %v24
    %58 = vmatprep.subr.mxu0 %v27
    %59 = vmatpush1.msra.mxu0 %v26
    %60 = vmatprep.subr.mxu0 %v29
    %61 = vmatpush1.msra.mxu0 %v28
    %62 = vmatprep.subr.mxu0 %v31
    %63 = vmatpush1.msra.mxu0 %v30
    %64 = vmatprep.subr.mxu0 %v33
    %65 = vmatpush1.msra.mxu0 %v32
    %66 = vmatprep.subr.mxu0 %v35
    %67 = vmatpush1.msra.mxu0 %v34
    %68 = vmatprep.subr.mxu0 %v37
    %69 = vmatpush1.msra.mxu0 %v36
    %70 = vmatprep.subr.mxu0 %v39
    %71 = vmatpush1.msra.mxu0 %v38
    %72 = vmatprep.subr.mxu0 %v41
    %73 = vmatpush1.msra.mxu0 %v40
    %74 = vmatprep.subr.mxu0 %v43
    %75 = vmatpush1.msra.mxu0 %v42
    %76 = vmatprep.subr.mxu0 %v45
    %77 = vmatpush1.msra.mxu0 %v44
    %78 = vmatprep.subr.mxu0 %v47
    %79 = vmatpush1.msra.mxu0 %v46
    %80 = vmatprep.subr.mxu0 0.0
    %81 = vmatpush1.msra.mxu0 0.0
    %82 = vmatprep.subr.mxu0 0.0
    %83 = vmatpush1.msra.mxu0 0.0
    %84 = vmatprep.subr.mxu0 0.0
    %85 = vmatpush1.msra.mxu0 0.0
    %86 = vmatprep.subr.mxu0 0.0
    %87 = vmatpush1.msra.mxu0 0.0
    %88 = vmatprep.subr.mxu0 0.0
    %89 = vmatpush1.msra.mxu0 0.0
    %90 = vmatprep.subr.mxu0 0.0
    %91 = vmatpush1.msra.mxu0 0.0
    %92 = vmatprep.subr.mxu0 0.0
    %93 = vmatpush1.msra.mxu0 0.0
    %94 = vmatprep.subr.mxu0 0.0
    %95 = vmatpush1.msra.mxu0 0.0
    %96 = vmatprep.subr.mxu0 0.0
    %97 = vmatpush1.msra.mxu0 0.0
    %98 = vmatprep.subr.mxu0 0.0
    %99 = vmatpush1.msra.mxu0 0.0
    %100 = vmatprep.subr.mxu0 0.0
    %101 = vmatpush1.msra.mxu0 0.0
    %102 = vmatprep.subr.mxu0 0.0
    %103 = vmatpush1.msra.mxu0 0.0
    %104 = vmatprep.subr.mxu0 0.0
    %105 = vmatpush1.msra.mxu0 0.0
    %106 = vmatprep.subr.mxu0 0.0
    %107 = vmatpush1.msra.mxu0 0.0
    %108 = vmatprep.subr.mxu0 0.0
    %109 = vmatpush1.msra.mxu0 0.0
    %110 = vmatprep.subr.mxu0 0.0
    %111 = vmatpush1.msra.mxu0 0.0
    %112 = vmatprep.mubr.f32.mxu0 0.0
    %113 = vmatmul.mubr.f32.gmra.mrb[0].mxu0 %v15
    %v114 = vpop.f32.mrb[0].mxu0
    %v115 = vadd.f32 0.0, %v114
    %v116 = vpop.f32.mrb[0].mxu0
    %v117 = vadd.f32 0.0, %v116
    %118 = vdwg.mxu0
    %v119 = vadd.f32 %v115, 1e-06
    %v120 = vadd.f32 %v117, 1e-06
    %v121 = vmul.f32 %v119, %v119
    %v122 = vmul.f32 %v120, %v120
    %v123 = vadd.f32 %v121, %v122
    %v124 = vlaneseq
    %v125 = vand.u32 %v124, 127
    %vm126 = vcmp.lt.s32.totalorder %v125, 9
    %vm127 = vcmp.eq.s32.totalorder %v125, 0
    %vm128 = vcmp.eq.s32.totalorder %v125, 8
    %vm129 = vmor %vm127, %vm128
    %v130 = vsel %vm129, 0.0625, 0.125
    %v131 = vsel %vm126, %v130, 0.0
    %v132 = vsel %vm126, %v123, -inf
    %133 = vmax.xlane.f32.xlu0 %v132
    %v134 = vpop.xlane.xlu0 %133
    %vm135 = vcmp.eq.f32.partialorder %v132, %v134
    %v136 = vsel %vm135, %v131, 0.0
    %v137 = vsel %vm135, -inf, %v132
    %138 = vmax.xlane.f32.xlu0 %v137
    %v139 = vpop.xlane.xlu0 %138
    %vm140 = vcmp.eq.f32.partialorder %v137, %v139
    %v141 = vsel %vm140, %v131, %v136
    %v142 = vsel %vm140, -inf, %v137
    %143 = vmax.xlane.f32.xlu0 %v142
    %v144 = vpop.xlane.xlu0 %143
    %vm145 = vcmp.eq.f32.partialorder %v142, %v144
    %v146 = vsel %vm145, %v131, %v141
    %v147 = vmul.f32 %v115, %v146
    %v148 = vmul.f32 %v117, %v146
    %149 = vmatprep.subr.mxu0 %v17
    %150 = vmatpush1.xpose.msra.mxu0 %v16
    %151 = vmatprep.subr.mxu0 %v19
    %152 = vmatpush1.xpose.msra.mxu0 %v18
    %153 = vmatprep.subr.mxu0 %v21
    %154 = vmatpush1.xpose.msra.mxu0 %v20
    %155 = vmatprep.subr.mxu0 %v23
    %156 = vmatpush1.xpose.msra.mxu0 %v22
    %157 = vmatprep.subr.mxu0 %v25
    %158 = vmatpush1.xpose.msra.mxu0 %v24
    %159 = vmatprep.subr.mxu0 %v27
    %160 = vmatpush1.xpose.msra.mxu0 %v26
    %161 = vmatprep.subr.mxu0 %v29
    %162 = vmatpush1.xpose.msra.mxu0 %v28
    %163 = vmatprep.subr.mxu0 %v31
    %164 = vmatpush1.xpose.msra.mxu0 %v30
    %165 = vmatprep.subr.mxu0 %v33
    %166 = vmatpush1.xpose.msra.mxu0 %v32
    %167 = vmatprep.subr.mxu0 %v35
    %168 = vmatpush1.xpose.msra.mxu0 %v34
    %169 = vmatprep.subr.mxu0 %v37
    %170 = vmatpush1.xpose.msra.mxu0 %v36
    %171 = vmatprep.subr.mxu0 %v39
    %172 = vmatpush1.xpose.msra.mxu0 %v38
    %173 = vmatprep.subr.mxu0 %v41
    %174 = vmatpush1.xpose.msra.mxu0 %v40
    %175 = vmatprep.subr.mxu0 %v43
    %176 = vmatpush1.xpose.msra.mxu0 %v42
    %177 = vmatprep.subr.mxu0 %v45
    %178 = vmatpush1.xpose.msra.mxu0 %v44
    %179 = vmatprep.subr.mxu0 %v47
    %180 = vmatpush1.xpose.msra.mxu0 %v46
    %181 = vmatprep.subr.mxu0 0.0
    %182 = vmatpush1.xpose.msra.mxu0 0.0
    %183 = vmatprep.subr.mxu0 0.0
    %184 = vmatpush1.xpose.msra.mxu0 0.0
    %185 = vmatprep.subr.mxu0 0.0
    %186 = vmatpush1.xpose.msra.mxu0 0.0
    %187 = vmatprep.subr.mxu0 0.0
    %188 = vmatpush1.xpose.msra.mxu0 0.0
    %189 = vmatprep.subr.mxu0 0.0
    %190 = vmatpush1.xpose.msra.mxu0 0.0
    %191 = vmatprep.subr.mxu0 0.0
    %192 = vmatpush1.xpose.msra.mxu0 0.0
    %193 = vmatprep.subr.mxu0 0.0
    %194 = vmatpush1.xpose.msra.mxu0 0.0
    %195 = vmatprep.subr.mxu0 0.0
    %196 = vmatpush1.xpose.msra.mxu0 0.0
    %197 = vmatprep.subr.mxu0 0.0
    %198 = vmatpush1.xpose.msra.mxu0 0.0
    %199 = vmatprep.subr.mxu0 0.0
    %200 = vmatpush1.xpose.msra.mxu0 0.0
    %201 = vmatprep.subr.mxu0 0.0
    %202 = vmatpush1.xpose.msra.mxu0 0.0
    %203 = vmatprep.subr.mxu0 0.0
    %204 = vmatpush1.xpose.msra.mxu0 0.0
    %205 = vmatprep.subr.mxu0 0.0
    %206 = vmatpush1.xpose.msra.mxu0 0.0
    %207 = vmatprep.subr.mxu0 0.0
    %208 = vmatpush1.xpose.msra.mxu0 0.0
    %209 = vmatprep.subr.mxu0 0.0
    %210 = vmatpush1.xpose.msra.mxu0 0.0
    %211 = vmatprep.subr.mxu0 0.0
    %212 = vmatpush1.xpose.msra.mxu0 0.0
    %213 = vmatprep.mubr.f32.mxu0 %v148
    %214 = vmatmul.mubr.f32.gmra.mrb[0].mxu0 %v147
    %v215 = vpop.f32.mrb[0].mxu0
    %v216 = vadd.f32 0.0, %v215
    %v217 = vpop.f32.mrb[0].mxu0
    %218 = vdwg.mxu0
    %219 = vst [vmem:[#allocation2] sm:$0xff] %v216
    %v220 = vsub.f32 %v15, %v216
    %221 = vst [vmem:[#allocation4] sm:$0xff] %v220
    // Predicated region
    $region10: #{topk_fft_decomp.1} parent=1 // pred_check
      _
    $region11: #{topk_fft_decomp.1} parent=1 // pred_check_branch
      %223 = sbr.rel (0) target = $region13
    $region12: #{topk_fft_decomp.1} parent=1 // pred_region
      %s225 = ssub.s32 128, 128
      %226 = vsyncadd [#allocation3], %s225
      %s228 = sshll.u32 [#allocation2], 4
      %s229 = int_to_ptr.vmem [resolvable:$true] %s228
      %231 = dma.vmem_to_hbm [thread:$0]  %s229, 128, %s2, [#allocation3]
    $region13: #{topk_fft_decomp.1} parent=1 // pred_fallthru
      _
    // Predicated region
    $region14: #{topk_fft_decomp.1} parent=1 // pred_check
      _
    $region15: #{topk_fft_decomp.1} parent=1 // pred_check_branch
      %233 = sbr.rel (0) target = $region17
    $region16: #{topk_fft_decomp.1} parent=1 // pred_region
      %s235 = ssub.s32 128, 128
      %236 = vsyncadd [#allocation5], %s235
      %s238 = sshll.u32 [#allocation4], 4
      %s239 = int_to_ptr.vmem [resolvable:$true] %s238
      %241 = dma.vmem_to_hbm [thread:$0]  %s239, 128, %s3, [#allocation5]
    $region17: #{topk_fft_decomp.1} parent=1 // pred_fallthru
      _
    // Predicated region
    $region18: #{topk_fft_decomp.1} parent=1 // pred_check
      _
    $region19: #{topk_fft_decomp.1} parent=1 // pred_check_branch
      %243 = sbr.rel (0) target = $region21
    $region20: #{topk_fft_decomp.1} parent=1 // pred_region
      %244 = dma.done [#allocation3], 128
    $region21: #{topk_fft_decomp.1} parent=1 // pred_fallthru
      _
    // Predicated region
    $region22: #{topk_fft_decomp.1} parent=1 // pred_check
      _
    $region23: #{topk_fft_decomp.1} parent=1 // pred_check_branch
      %246 = sbr.rel (0) target = $region25
    $region24: #{topk_fft_decomp.1} parent=1 // pred_region
      %247 = dma.done [#allocation5], 128
    $region25: #{topk_fft_decomp.1} parent=1 // pred_fallthru
      _
    %248 = vsyncpa [#allocation3], 1
    %249 = vsyncpa [#allocation5], 1

</llo_original>
